<compile_context>
chip_gen: v7x
topology: tpu7x:2x2x1
jax: 0.10.0
libtpu: 0.0.40
codegen_flags: <defaults>
</compile_context>

<pallas_src>
import jax
import jax.numpy as jnp
from jax.experimental import pallas as pl
from jax.experimental.pallas import tpu as pltpu

_EPS = 1e-8  # torch.nn.functional.cosine_similarity default eps


def _make_kernel(P, B, TB, tiles_per_core, inv_PB, stacked, need_mask):
    num_inputs = 1 if stacked else P

    def kernel(*refs):
        z_refs = refs[:num_inputs]
        out_ref = refs[num_inputs]       # (1, 8, 128) f32 per-core output block
        acc_ref = refs[num_inputs + 1]   # (1, 1) f32 VMEM scratch accumulator

        c = pl.program_id(0)             # core-split index ("parallel")
        b = pl.program_id(1)             # batch-tile index ("arbitrary")

        @pl.when(b == 0)
        def _():
            acc_ref[...] = jnp.zeros_like(acc_ref)

        if stacked:
            def patch(p):
                return z_refs[0][p].astype(jnp.float32)          # [TB, D]
        else:
            def patch(p):
                return z_refs[p][...].astype(jnp.float32)        # [TB, D]

        # ---- pass 1: patch mean z_avg (all patches needed) ---------------
        z_avg = patch(0)
        for p in range(1, P):
            z_avg = z_avg + patch(p)
        z_avg = z_avg * jnp.float32(1.0 / P)                     # [TB, D]
        avg_sumsq = jnp.sum(z_avg * z_avg, axis=-1, keepdims=True)

        # ---- pass 2: per-patch cosine, one f32 patch live at a time ------
        # TODO(synk): on v6e/v7x, if the bundle dump shows the 2-XLU
        # cross-lane-reduce slot binding before HBM, offload these axis=-1
        # sums to the idle MXU via jnp.dot(prod, ones((D, 1)),
        # preferred_element_type=jnp.float32).
        partial = jnp.zeros((TB, 1), jnp.float32)
        for p in range(P):
            z = patch(p)
            dots = jnp.sum(z * z_avg, axis=-1, keepdims=True)    # [TB, 1]
            sumsq = jnp.sum(z * z, axis=-1, keepdims=True)       # [TB, 1]
            # cos = dots * rsqrt(max(||z||^2 * ||z_avg||^2, eps^2))
            inv = jax.lax.rsqrt(
                jnp.maximum(sumsq * avg_sumsq, jnp.float32(_EPS * _EPS)))
            partial = partial + dots * inv

        if need_mask:
            g = c * tiles_per_core + b                 # global batch tile
            tile_overruns = (g * TB + TB) > B          # scalar bool

            @pl.when(tile_overruns)
            def _():
                # Partial (or fully duplicated / clamped) tile: zero padded
                # rows.  jnp.where picks 0.0 even if padded garbage made
                # inf/nan, and the eps^2 clamp prevents div-by-zero.
                row = jax.lax.broadcasted_iota(jnp.int32, (TB, 1), 0) + g * TB
                masked = jnp.where(row < B, partial, 0.0)
                acc_ref[...] = acc_ref[...] + jnp.sum(
                    masked, axis=0, keepdims=True)

            @pl.when(jnp.logical_not(tile_overruns))
            def _():
                acc_ref[...] = acc_ref[...] + jnp.sum(
                    partial, axis=0, keepdims=True)
        else:
            acc_ref[...] = acc_ref[...] + jnp.sum(
                partial, axis=0, keepdims=True)

        @pl.when(b == pl.num_programs(1) - 1)
        def _():
            # NOTE: a single f32 scalar accumulates the whole per-core batch
            # sum; fine for realistic B*P, widen if B ever reaches ~1e6+.
            val = acc_ref[...] * jnp.float32(inv_PB)             # (1, 1)
            out_ref[...] = jnp.broadcast_to(
                val.reshape(1, 1, 1), out_ref.shape)

    return kernel


def _sublane_multiple(dtype):
    itemsize = jnp.dtype(dtype).itemsize
    if itemsize >= 4:
        return 8
    if itemsize == 2:
        return 16
    return 32


def _vmem_params():
    """Generation-aware (physical, budget-for-TB, scoped-limit) in bytes."""
    phys = 64 * 1024 * 1024  # conservative fallback (v7x-sized)
    try:
        info = pltpu.get_tpu_info()
        phys = int(getattr(info, "vmem_capacity_bytes", phys)) or phys
    except Exception:
        pass
    if phys > 64 * 1024 * 1024:
        # v5e / v6e: 128 MiB physical VMEM -> bigger streamed tiles.
        return phys, 64 * 1024 * 1024, 96 * 1024 * 1024
    # v7x: 64 MiB physical VMEM.
    return phys, 32 * 1024 * 1024, 48 * 1024 * 1024


def _choose_tb(P, B, D, elem_bytes, sub_mult, tb_max, vmem_budget):
    # Per batch row: double-buffered input blocks (2 * P * D * elem) plus the
    # f32 z_avg and one live f32 patch (8 * D bytes), small temporaries.
    per_row = 2 * P * D * elem_bytes + 8 * D + 64
    tb = vmem_budget // max(per_row, 1)
    tb = min(tb, tb_max, B)
    if tb >= B:
        return B, per_row
    tb = max(sub_mult, (tb // sub_mult) * sub_mult)
    return min(tb, B), per_row


def similarity_loss(z_list, z_avg=None, *, tb_max=512, core_splits=2):
    """z_list: sequence of [B, D] arrays OR a stacked [P, B, D] array.

    Returns (-z_sim, z_sim) as float32 scalars, matching the PyTorch module.
    `z_avg` is accepted for signature parity but (as in the reference module)
    it is ignored and recomputed from z_list.
    """
    if isinstance(z_list, (list, tuple)):
        stacked = False
        operands = list(z_list)
        P = len(operands)
        B, D = operands[0].shape
        dtype = operands[0].dtype
    else:
        # Keep the stacked array as ONE pallas input so XLA does not
        # materialize P sliced HBM copies in front of the kernel.
        stacked = True
        P, B, D = z_list.shape
        dtype = z_list.dtype
        operands = [z_list]

    elem_bytes = jnp.dtype(dtype).itemsize
    sub_mult = _sublane_multiple(dtype)
    phys_vmem, vmem_budget, vmem_limit = _vmem_params()

    TB, per_row = _choose_tb(P, B, D, elem_bytes, sub_mult, tb_max, vmem_budget)
    n_tiles = pl.cdiv(B, TB)

    num_splits = max(1, min(core_splits, n_tiles))
    tiles_per_core = pl.cdiv(n_tiles, num_splits)
    total_tiles = num_splits * tiles_per_core
    need_mask = (B % TB != 0) or (total_tiles != n_tiles)

    # Validate the chosen tile actually fits the scoped VMEM limit.
    footprint = TB * per_row + (2 << 20)
    if footprint > vmem_limit:
        vmem_limit = footprint
    if vmem_limit > phys_vmem - (4 << 20):
        raise ValueError(
            f"Similarity_Loss pallas kernel needs ~{footprint} VMEM bytes per "
            f"step but only {phys_vmem} are physically available; reduce P*D "
            f"or tb_max.")

    kernel = _make_kernel(P, B, TB, tiles_per_core, 1.0 / (P * B),
                          stacked, need_mask)

    last_tile = n_tiles - 1

    def batch_block(c, b):
        # Clamp so the duplicated tail tile (odd n_tiles on a 2-way split)
        # still DMAs in-bounds data; its rows are masked out in the kernel.
        return jnp.minimum(c * tiles_per_core + b, last_tile)

    if stacked:
        in_specs = [pl.BlockSpec((P, TB, D),
                                 lambda c, b: (0, batch_block(c, b), 0))]
    else:
        in_specs = [pl.BlockSpec((TB, D),
                                 lambda c, b: (batch_block(c, b), 0))
                    for _ in range(P)]

    out = pl.pallas_call(
        kernel,
        # One lane/sublane-aligned (8,128) block per core-split; every element
        # of a block holds that core's partial result.
        out_shape=jax.ShapeDtypeStruct((num_splits, 8, 128), jnp.float32),
        grid=(num_splits, tiles_per_core),
        in_specs=in_specs,
        out_specs=pl.BlockSpec((1, 8, 128), lambda c, b: (c, 0, 0)),
        scratch_shapes=[pltpu.VMEM((1, 1), jnp.float32)],
        compiler_params=pltpu.CompilerParams(
            # Core-split axis is independent -> "parallel" (sharded across the
            # two TCs on v7x); the batch axis carries the scratch accumulator
            # -> "arbitrary".
            dimension_semantics=("parallel", "arbitrary"),
            vmem_limit_bytes=int(vmem_limit),
        ),
        cost_estimate=pl.CostEstimate(
            flops=6 * P * B * D,
            transcendentals=P * B,
            bytes_accessed=P * B * D * elem_bytes,
        ),
    )(*operands)

    z_sim = jnp.sum(out[:, 0, 0])
    return -z_sim, jax.lax.stop_gradient(z_sim)


def _reference(z):
    # Pure-JAX mirror of the PyTorch forward (same eps handling).
    z = z.astype(jnp.float32)
    P = z.shape[0]
    z_avg = jnp.mean(z, axis=0)
    dots = jnp.sum(z * z_avg[None], axis=-1)
    sumsq_z = jnp.sum(z * z, axis=-1)
    sumsq_a = jnp.sum(z_avg * z_avg, axis=-1)
    cos = dots / jnp.sqrt(jnp.maximum(sumsq_z * sumsq_a[None], _EPS * _EPS))
    z_sim = jnp.sum(jnp.mean(cos, axis=1)) / P
    return -z_sim, z_sim


if __name__ == "__main__":
    key = jax.random.PRNGKey(0)

    # Case 1: small, module-consistent shapes (single-tile path).
    P, B, D = 4, 8, 32
    keys = jax.random.split(key, P + 1)
    z_list = [jax.random.normal(keys[i], (B, D), dtype=jnp.float32)
              for i in range(P)]
    z_avg_in = jax.random.normal(keys[P], (B, D), dtype=jnp.float32)  # ignored
    neg, pos = similarity_loss(z_list, z_avg_in)
    jax.block_until_ready(neg)
    jax.block_until_ready(pos)
    ref_neg, ref_pos = _reference(jnp.stack(z_list, axis=0))
    assert jnp.allclose(neg, ref_neg, atol=1e-5, rtol=1e-5), (neg, ref_neg)
    assert jnp.allclose(pos, ref_pos, atol=1e-5, rtol=1e-5), (pos, ref_pos)

    # Case 2: batch not divisible by the tile -> 2-way core split, masked
    # last tile, accumulator carried across grid steps.
    P2, B2, D2 = 3, 24, 128
    keys2 = jax.random.split(jax.random.PRNGKey(1), P2)
    z_list2 = [jax.random.normal(keys2[i], (B2, D2), dtype=jnp.float32)
               for i in range(P2)]
    neg2, pos2 = similarity_loss(z_list2, None, tb_max=16)
    jax.block_until_ready(pos2)
    r_neg2, r_pos2 = _reference(jnp.stack(z_list2, axis=0))
    assert jnp.allclose(pos2, r_pos2, atol=1e-5, rtol=1e-5), (pos2, r_pos2)
    assert jnp.allclose(neg2, r_neg2, atol=1e-5, rtol=1e-5), (neg2, r_neg2)

    # Case 3: bf16 inputs stay bf16 in HBM (TB rounds to 16-row packing);
    # the f32 cast happens in VMEM.
    z_list3 = [z.astype(jnp.bfloat16) for z in z_list2]
    neg3, pos3 = similarity_loss(z_list3, None, tb_max=16)
    jax.block_until_ready(pos3)
    r_neg3, r_pos3 = _reference(
        jnp.stack(z_list3, axis=0).astype(jnp.float32))
    assert jnp.allclose(pos3, r_pos3, atol=2e-2, rtol=2e-2), (pos3, r_pos3)

    # Case 4: stacked [P, B, D] input path -> single pallas input, no hidden
    # HBM slice copies in the wrapper.
    z_stacked = jnp.stack(z_list2, axis=0)
    neg4, pos4 = similarity_loss(z_stacked, None, tb_max=16)
    jax.block_until_ready(pos4)
    assert jnp.allclose(pos4, r_pos2, atol=1e-5, rtol=1e-5), (pos4, r_pos2)
    assert jnp.allclose(neg4, r_neg2, atol=1e-5, rtol=1e-5), (neg4, r_neg2)

    # Case 5: odd number of batch tiles on a 2-way split -> one duplicated,
    # fully-masked tail tile (exercises the clamped index_map).
    P5, B5, D5 = 2, 40, 128
    keys5 = jax.random.split(jax.random.PRNGKey(2), P5)
    z_list5 = [jax.random.normal(keys5[i], (B5, D5), dtype=jnp.float32)
               for i in range(P5)]
    neg5, pos5 = similarity_loss(z_list5, None, tb_max=16)
    jax.block_until_ready(pos5)
    r_neg5, r_pos5 = _reference(jnp.stack(z_list5, axis=0))
    assert jnp.allclose(pos5, r_pos5, atol=1e-5, rtol=1e-5), (pos5, r_pos5)
    assert jnp.allclose(neg5, r_neg5, atol=1e-5, rtol=1e-5), (neg5, r_neg5)

    print("KERNEL_OK")
</pallas_src>

<mosaic_0001>
module attributes {stable_mosaic.version = 11 : i64} {
  func.func @kernel(%arg0: i32, %arg1: i32, %arg2: memref<8x32xf32, #tpu.memory_space<vmem>>, %arg3: memref<8x32xf32, #tpu.memory_space<vmem>>, %arg4: memref<8x32xf32, #tpu.memory_space<vmem>>, %arg5: memref<8x32xf32, #tpu.memory_space<vmem>>, %arg6: memref<1x8x128xf32, #tpu.memory_space<vmem>>, %arg7: memref<1x1xf32, #tpu.memory_space<vmem>>) attributes {dimension_semantics = [#tpu.dimension_semantics<parallel>, #tpu.dimension_semantics<arbitrary>], iteration_bounds = array<i64: 1, 1>, scalar_prefetch = 0 : i64, scratch_operands = 1 : i64, tpu.core_type = #tpu.core_type<tc>, window_params = [{transform_indices = @transform_0, window_bounds = array<i64: 8, 32>}, {transform_indices = @transform_1, window_bounds = array<i64: 8, 32>}, {transform_indices = @transform_2, window_bounds = array<i64: 8, 32>}, {transform_indices = @transform_3, window_bounds = array<i64: 8, 32>}, {transform_indices = @transform_4, window_bounds = array<i64: 1, 8, 128>}]} {
    %c0_i32 = arith.constant 0 : i32
    %0 = arith.cmpi eq, %arg1, %c0_i32 : i32
    %1 = arith.extui %0 : i1 to i32
    %c0_i32_0 = arith.constant 0 : i32
    %2 = arith.cmpi ne, %1, %c0_i32_0 : i32
    scf.if %2 {
      %cst_37 = arith.constant 0.000000e+00 : f32
      %76 = vector.broadcast %cst_37 : f32 to vector<1x1xf32>
      %c0_38 = arith.constant 0 : index
      %c0_39 = arith.constant 0 : index
      %77 = vector.load %arg7[%c0_38, %c0_39] : memref<1x1xf32, #tpu.memory_space<vmem>>, vector<1x1xf32>
      tpu.vector_store %arg7[%c0_38, %c0_39], %76 {strides = array<i32>} : memref<1x1xf32, #tpu.memory_space<vmem>>, vector<1x1xf32>,
    } else {
    }
    %c0 = arith.constant 0 : index
    %c0_1 = arith.constant 0 : index
    %3 = vector.load %arg2[%c0, %c0_1] : memref<8x32xf32, #tpu.memory_space<vmem>>, vector<8x32xf32>
    %c0_2 = arith.constant 0 : index
    %c0_3 = arith.constant 0 : index
    %4 = vector.load %arg3[%c0_2, %c0_3] : memref<8x32xf32, #tpu.memory_space<vmem>>, vector<8x32xf32>
    %5 = arith.addf %3, %4 : vector<8x32xf32>
    %c0_4 = arith.constant 0 : index
    %c0_5 = arith.constant 0 : index
    %6 = vector.load %arg4[%c0_4, %c0_5] : memref<8x32xf32, #tpu.memory_space<vmem>>, vector<8x32xf32>
    %7 = arith.addf %5, %6 : vector<8x32xf32>
    %c0_6 = arith.constant 0 : index
    %c0_7 = arith.constant 0 : index
    %8 = vector.load %arg5[%c0_6, %c0_7] : memref<8x32xf32, #tpu.memory_space<vmem>>, vector<8x32xf32>
    %9 = arith.addf %7, %8 : vector<8x32xf32>
    %cst = arith.constant 2.500000e-01 : f32
    %10 = vector.broadcast %cst : f32 to vector<8x32xf32>
    %11 = arith.mulf %9, %10 : vector<8x32xf32>
    %12 = arith.mulf %11, %11 : vector<8x32xf32>
    %cst_8 = arith.constant dense<0.000000e+00> : vector<8xf32>
    %13 = vector.multi_reduction <add>, %12, %cst_8 [1] : vector<8x32xf32> to vector<8xf32>
    %14 = vector.shape_cast %13 : vector<8xf32> to vector<8x1xf32>
    %cst_9 = arith.constant 0.000000e+00 : f32
    %15 = vector.broadcast %cst_9 : f32 to vector<8x1xf32>
    %c0_10 = arith.constant 0 : index
    %c0_11 = arith.constant 0 : index
    %16 = vector.load %arg2[%c0_10, %c0_11] : memref<8x32xf32, #tpu.memory_space<vmem>>, vector<8x32xf32>
    %17 = arith.mulf %16, %11 : vector<8x32xf32>
    %cst_12 = arith.constant dense<0.000000e+00> : vector<8xf32>
    %18 = vector.multi_reduction <add>, %17, %cst_12 [1] : vector<8x32xf32> to vector<8xf32>
    %19 = vector.shape_cast %18 : vector<8xf32> to vector<8x1xf32>
    %20 = arith.mulf %16, %16 : vector<8x32xf32>
    %cst_13 = arith.constant dense<0.000000e+00> : vector<8xf32>
    %21 = vector.multi_reduction <add>, %20, %cst_13 [1] : vector<8x32xf32> to vector<8xf32>
    %22 = vector.shape_cast %21 : vector<8xf32> to vector<8x1xf32>
    %23 = arith.mulf %22, %14 : vector<8x1xf32>
    %cst_14 = arith.constant 1.000000e-16 : f32
    %24 = vector.broadcast %cst_14 : f32 to vector<8x1xf32>
    %25 = arith.maximumf %23, %24 : vector<8x1xf32>
    %26 = math.rsqrt %25 : vector<8x1xf32>
    %27 = arith.mulf %19, %26 : vector<8x1xf32>
    %28 = arith.addf %15, %27 : vector<8x1xf32>
    %c0_15 = arith.constant 0 : index
    %c0_16 = arith.constant 0 : index
    %29 = vector.load %arg3[%c0_15, %c0_16] : memref<8x32xf32, #tpu.memory_space<vmem>>, vector<8x32xf32>
    %30 = arith.mulf %29, %11 : vector<8x32xf32>
    %cst_17 = arith.constant dense<0.000000e+00> : vector<8xf32>
    %31 = vector.multi_reduction <add>, %30, %cst_17 [1] : vector<8x32xf32> to vector<8xf32>
    %32 = vector.shape_cast %31 : vector<8xf32> to vector<8x1xf32>
    %33 = arith.mulf %29, %29 : vector<8x32xf32>
    %cst_18 = arith.constant dense<0.000000e+00> : vector<8xf32>
    %34 = vector.multi_reduction <add>, %33, %cst_18 [1] : vector<8x32xf32> to vector<8xf32>
    %35 = vector.shape_cast %34 : vector<8xf32> to vector<8x1xf32>
    %36 = arith.mulf %35, %14 : vector<8x1xf32>
    %cst_19 = arith.constant 1.000000e-16 : f32
    %37 = vector.broadcast %cst_19 : f32 to vector<8x1xf32>
    %38 = arith.maximumf %36, %37 : vector<8x1xf32>
    %39 = math.rsqrt %38 : vector<8x1xf32>
    %40 = arith.mulf %32, %39 : vector<8x1xf32>
    %41 = arith.addf %28, %40 : vector<8x1xf32>
    %c0_20 = arith.constant 0 : index
    %c0_21 = arith.constant 0 : index
    %42 = vector.load %arg4[%c0_20, %c0_21] : memref<8x32xf32, #tpu.memory_space<vmem>>, vector<8x32xf32>
    %43 = arith.mulf %42, %11 : vector<8x32xf32>
    %cst_22 = arith.constant dense<0.000000e+00> : vector<8xf32>
    %44 = vector.multi_reduction <add>, %43, %cst_22 [1] : vector<8x32xf32> to vector<8xf32>
    %45 = vector.shape_cast %44 : vector<8xf32> to vector<8x1xf32>
    %46 = arith.mulf %42, %42 : vector<8x32xf32>
    %cst_23 = arith.constant dense<0.000000e+00> : vector<8xf32>
    %47 = vector.multi_reduction <add>, %46, %cst_23 [1] : vector<8x32xf32> to vector<8xf32>
    %48 = vector.shape_cast %47 : vector<8xf32> to vector<8x1xf32>
    %49 = arith.mulf %48, %14 : vector<8x1xf32>
    %cst_24 = arith.constant 1.000000e-16 : f32
    %50 = vector.broadcast %cst_24 : f32 to vector<8x1xf32>
    %51 = arith.maximumf %49, %50 : vector<8x1xf32>
    %52 = math.rsqrt %51 : vector<8x1xf32>
    %53 = arith.mulf %45, %52 : vector<8x1xf32>
    %54 = arith.addf %41, %53 : vector<8x1xf32>
    %c0_25 = arith.constant 0 : index
    %c0_26 = arith.constant 0 : index
    %55 = vector.load %arg5[%c0_25, %c0_26] : memref<8x32xf32, #tpu.memory_space<vmem>>, vector<8x32xf32>
    %56 = arith.mulf %55, %11 : vector<8x32xf32>
    %cst_27 = arith.constant dense<0.000000e+00> : vector<8xf32>
    %57 = vector.multi_reduction <add>, %56, %cst_27 [1] : vector<8x32xf32> to vector<8xf32>
    %58 = vector.shape_cast %57 : vector<8xf32> to vector<8x1xf32>
    %59 = arith.mulf %55, %55 : vector<8x32xf32>
    %cst_28 = arith.constant dense<0.000000e+00> : vector<8xf32>
    %60 = vector.multi_reduction <add>, %59, %cst_28 [1] : vector<8x32xf32> to vector<8xf32>
    %61 = vector.shape_cast %60 : vector<8xf32> to vector<8x1xf32>
    %62 = arith.mulf %61, %14 : vector<8x1xf32>
    %cst_29 = arith.constant 1.000000e-16 : f32
    %63 = vector.broadcast %cst_29 : f32 to vector<8x1xf32>
    %64 = arith.maximumf %62, %63 : vector<8x1xf32>
    %65 = math.rsqrt %64 : vector<8x1xf32>
    %66 = arith.mulf %58, %65 : vector<8x1xf32>
    %67 = arith.addf %54, %66 : vector<8x1xf32>
    %c0_30 = arith.constant 0 : index
    %c0_31 = arith.constant 0 : index
    %68 = vector.load %arg7[%c0_30, %c0_31] : memref<1x1xf32, #tpu.memory_space<vmem>>, vector<1x1xf32>
    %cst_32 = arith.constant dense<0.000000e+00> : vector<1xf32>
    %69 = vector.multi_reduction <add>, %67, %cst_32 [0] : vector<8x1xf32> to vector<1xf32>
    %70 = vector.shape_cast %69 : vector<1xf32> to vector<1x1xf32>
    %71 = arith.addf %68, %70 : vector<1x1xf32>
    %c0_33 = arith.constant 0 : index
    %c0_34 = arith.constant 0 : index
    %72 = vector.load %arg7[%c0_33, %c0_34] : memref<1x1xf32, #tpu.memory_space<vmem>>, vector<1x1xf32>
    tpu.vector_store %arg7[%c0_33, %c0_34], %71 {strides = array<i32>} : memref<1x1xf32, #tpu.memory_space<vmem>>, vector<1x1xf32>,
    %c0_i32_35 = arith.constant 0 : i32
    %73 = arith.cmpi eq, %arg1, %c0_i32_35 : i32
    %74 = arith.extui %73 : i1 to i32
    %c0_i32_36 = arith.constant 0 : i32
    %75 = arith.cmpi ne, %74, %c0_i32_36 : i32
    scf.if %75 {
      %c0_37 = arith.constant 0 : index
      %c0_38 = arith.constant 0 : index
      %76 = vector.load %arg7[%c0_37, %c0_38] : memref<1x1xf32, #tpu.memory_space<vmem>>, vector<1x1xf32>
      %cst_39 = arith.constant 3.125000e-02 : f32
      %77 = vector.broadcast %cst_39 : f32 to vector<1x1xf32>
      %78 = arith.mulf %76, %77 : vector<1x1xf32>
      %79 = vector.shape_cast %78 : vector<1x1xf32> to vector<1x1x1xf32>
      %80 = vector.shape_cast %79 : vector<1x1x1xf32> to vector<1x1x1xf32>
      %81 = vector.broadcast %80 : vector<1x1x1xf32> to vector<1x8x128xf32>
      %c0_40 = arith.constant 0 : index
      %c0_41 = arith.constant 0 : index
      %c0_42 = arith.constant 0 : index
      %82 = vector.load %arg6[%c0_40, %c0_41, %c0_42] : memref<1x8x128xf32, #tpu.memory_space<vmem>>, vector<1x8x128xf32>
      tpu.vector_store %arg6[%c0_40, %c0_41, %c0_42], %81 {strides = array<i32>} : memref<1x8x128xf32, #tpu.memory_space<vmem>>, vector<1x8x128xf32>,
    } else {
    }
    return
  }
  func.func @transform_0(%arg0: i32, %arg1: i32) -> (i32, i32) {
    %c1_i32 = arith.constant 1 : i32
    %0 = arith.muli %arg0, %c1_i32 : i32
    %1 = arith.addi %0, %arg1 : i32
    %c0_i32 = arith.constant 0 : i32
    %2 = arith.minsi %1, %c0_i32 : i32
    %c0_i32_0 = arith.constant 0 : i32
    %c0_i32_1 = arith.constant 0 : i32
    return %2, %c0_i32_0 : i32, i32
  }
  func.func @transform_1(%arg0: i32, %arg1: i32) -> (i32, i32) {
    %c1_i32 = arith.constant 1 : i32
    %0 = arith.muli %arg0, %c1_i32 : i32
    %1 = arith.addi %0, %arg1 : i32
    %c0_i32 = arith.constant 0 : i32
    %2 = arith.minsi %1, %c0_i32 : i32
    %c0_i32_0 = arith.constant 0 : i32
    %c0_i32_1 = arith.constant 0 : i32
    return %2, %c0_i32_0 : i32, i32
  }
  func.func @transform_2(%arg0: i32, %arg1: i32) -> (i32, i32) {
    %c1_i32 = arith.constant 1 : i32
    %0 = arith.muli %arg0, %c1_i32 : i32
    %1 = arith.addi %0, %arg1 : i32
    %c0_i32 = arith.constant 0 : i32
    %2 = arith.minsi %1, %c0_i32 : i32
    %c0_i32_0 = arith.constant 0 : i32
    %c0_i32_1 = arith.constant 0 : i32
    return %2, %c0_i32_0 : i32, i32
  }
  func.func @transform_3(%arg0: i32, %arg1: i32) -> (i32, i32) {
    %c1_i32 = arith.constant 1 : i32
    %0 = arith.muli %arg0, %c1_i32 : i32
    %1 = arith.addi %0, %arg1 : i32
    %c0_i32 = arith.constant 0 : i32
    %2 = arith.minsi %1, %c0_i32 : i32
    %c0_i32_0 = arith.constant 0 : i32
    %c0_i32_1 = arith.constant 0 : i32
    return %2, %c0_i32_0 : i32, i32
  }
  func.func @transform_4(%arg0: i32, %arg1: i32) -> (i32, i32, i32) {
    %c0_i32 = arith.constant 0 : i32
    %c0_i32_0 = arith.constant 0 : i32
    %c0_i32_1 = arith.constant 0 : i32
    return %arg0, %c0_i32, %c0_i32_0 : i32, i32, i32
  }
}

</mosaic_0001>

<llo_original>
// kernel: tpu_custom_call.1
$region0: #{tpu_custom_call.1}
  #allocation0 [shape = 'u32[]', space=smem, size = 0x4, offset = 0x4, fixed_abs, tag = 'smem constant byte address 0x4 - core index']
  #allocation1 [shape = 'u32[144,128]{1,0:T(1,128)}', space=vmem, size = 0x12000, scoped, tag = 'internal scratch']
  #allocation2 [shape = 'f32[1,1]{1,0:T(1,128)}', space=vmem, size = 0x200, scoped, tag = 'scratch operand']
  %s0 = inlined_call_operand.hbm [shape: f32[8,32], index: 0, kind: input, shape index: {}]
  %s1 = inlined_call_operand.hbm [shape: f32[8,32], index: 1, kind: input, shape index: {}]
  %s2 = inlined_call_operand.hbm [shape: f32[8,32], index: 2, kind: input, shape index: {}]
  %s3 = inlined_call_operand.vmem [shape: f32[8,32], index: 3, kind: input, shape index: {}]
  %s4 = inlined_call_operand.hbm [shape: f32[1,8,128], index: 4, kind: output, shape index: {}]
  %s5 = sld [smem:[#allocation0]]
  $region46: #{tpu_custom_call.1} parent=0
    _
  %s7 = ssub.s32 1, %s5
  %s8 = scalar_select 0, %s7, %s5
  $region1: #{tpu_custom_call.1} parent=0
    #allocation3 [shape = 'u8[4096]{0}', space=vmem, size = 0x1000, scoped, tag = 'input window, operand 0, single buffered']
    #allocation4 [shape = 's32[1]{0}', space=sflag, size = 0x4, scoped, tag = 'scoped memory for tpu_custom_call.1']
    #allocation5 [shape = 's32[1]{0}', space=sflag, size = 0x4, scoped, tag = 'scoped memory for tpu_custom_call.1']
    #allocation6 [shape = 'u8[4096]{0}', space=vmem, size = 0x1000, scoped, tag = 'input window, operand 1, single buffered']
    #allocation7 [shape = 's32[1]{0}', space=sflag, size = 0x4, scoped, tag = 'scoped memory for tpu_custom_call.1']
    #allocation8 [shape = 'u8[4096]{0}', space=vmem, size = 0x1000, scoped, tag = 'input window, operand 2, single buffered']
    #allocation9 [shape = 'u8[4096]{0}', space=vmem, size = 0x1000, scoped, tag = 'output window, operand 0, single buffered']
    %9 = vsyncpa [#allocation4], 0
    %10 = vsyncpa [#allocation7], 0
    %11 = vsyncpa [#allocation5], 0
    // Predicated region
    $region2: #{tpu_custom_call.1} parent=1 // pred_check
      _
    $region3: #{tpu_custom_call.1} parent=1 // pred_check_branch
      %13 = sbr.rel (0) target = $region5
    $region4: #{tpu_custom_call.1} parent=1 // pred_region
      %s14 = sadd.s32 0, 0
      %p15 = scmp.lt.s32.totalorder %s14, 0
      %s16 = scalar_select %p15, %s14, 0
      %s18 = ssub.s32 128, 128
      %19 = vsyncadd [#allocation4], %s18
      %s20 = smul.addr %s16, 128
      %s21 = scalar_lea.hbm %s0, %s20
      %s23 = sshll.u32 [#allocation3], 4
      %s24 = int_to_ptr.vmem [resolvable:$true] %s23
      %26 = dma.hbm_to_vmem [thread:$0]  %s21, 128, %s24, [#allocation4]
    $region5: #{tpu_custom_call.1} parent=1 // pred_fallthru
      _
    // Predicated region
    $region6: #{tpu_custom_call.1} parent=1 // pred_check
      _
    $region7: #{tpu_custom_call.1} parent=1 // pred_check_branch
      %28 = sbr.rel (0) target = $region9
    $region8: #{tpu_custom_call.1} parent=1 // pred_region
      %s29 = sadd.s32 0, 0
      %p30 = scmp.lt.s32.totalorder %s29, 0
      %s31 = scalar_select %p30, %s29, 0
      %s33 = ssub.s32 128, 128
      %34 = vsyncadd [#allocation7], %s33
      %s35 = smul.addr %s31, 128
      %s36 = scalar_lea.hbm %s1, %s35
      %s38 = sshll.u32 [#allocation6], 4
      %s39 = int_to_ptr.vmem [resolvable:$true] %s38
      %41 = dma.hbm_to_vmem [thread:$0]  %s36, 128, %s39, [#allocation7]
    $region9: #{tpu_custom_call.1} parent=1 // pred_fallthru
      _
    // Predicated region
    $region10: #{tpu_custom_call.1} parent=1 // pred_check
      _
    $region11: #{tpu_custom_call.1} parent=1 // pred_check_branch
      %43 = sbr.rel (0) target = $region13
    $region12: #{tpu_custom_call.1} parent=1 // pred_region
      %s44 = sadd.s32 0, 0
      %p45 = scmp.lt.s32.totalorder %s44, 0
      %s46 = scalar_select %p45, %s44, 0
      %s48 = ssub.s32 128, 128
      %49 = vsyncadd [#allocation7], %s48
      %s50 = smul.addr %s46, 128
      %s51 = scalar_lea.hbm %s2, %s50
      %s53 = sshll.u32 [#allocation8], 4
      %s54 = int_to_ptr.vmem [resolvable:$true] %s53
      %56 = dma.hbm_to_vmem [thread:$0]  %s51, 128, %s54, [#allocation7]
    $region13: #{tpu_custom_call.1} parent=1 // pred_fallthru
      _
    // Predicated region
    $region14: #{tpu_custom_call.1} parent=1 // pred_check
      _
    $region15: #{tpu_custom_call.1} parent=1 // pred_check_branch
      %58 = sbr.rel (0) target = $region17
    $region16: #{tpu_custom_call.1} parent=1 // pred_region
      %s59 = sadd.s32 0, 0
      %p60 = scmp.lt.s32.totalorder %s59, 0
      %s61 = scalar_select %p60, %s59, 0
      %p62 = scmp.lt.s32.totalorder %s61, 0
      %s63 = scalar_select %p62, %s61, 0
      %s64 = smul.addr %s63, 8
      %s65 = scalar_lea.vmem %s3, %s64
      %s66 = sadd.s32 0, 0
      %p67 = scmp.lt.s32.totalorder %s66, 0
      %s68 = scalar_select %p67, %s66, 0
    $region17: #{tpu_custom_call.1} parent=1 // pred_fallthru
      _
    // Predicated region
    $region18: #{tpu_custom_call.1} parent=1 // pred_check
      _
    $region19: #{tpu_custom_call.1} parent=1 // pred_check_branch
      %70 = sbr.rel (0) target = $region21
    $region20: #{tpu_custom_call.1} parent=1 // pred_region
      %71 = dma.done [#allocation4], 128
    $region21: #{tpu_custom_call.1} parent=1 // pred_fallthru
      _
    // Predicated region
    $region22: #{tpu_custom_call.1} parent=1 // pred_check
      _
    $region23: #{tpu_custom_call.1} parent=1 // pred_check_branch
      %73 = sbr.rel (0) target = $region25
    $region24: #{tpu_custom_call.1} parent=1 // pred_region
      %74 = dma.done [#allocation7], 128
    $region25: #{tpu_custom_call.1} parent=1 // pred_fallthru
      _
    // Predicated region
    $region26: #{tpu_custom_call.1} parent=1 // pred_check
      _
    $region27: #{tpu_custom_call.1} parent=1 // pred_check_branch
      %76 = sbr.rel (0) target = $region29
    $region28: #{tpu_custom_call.1} parent=1 // pred_region
      %77 = dma.done [#allocation7], 128
    $region29: #{tpu_custom_call.1} parent=1 // pred_fallthru
      _
    %s78 = sadd.s32 0, 0
    %p79 = scmp.lt.s32.totalorder %s78, 0
    %s80 = scalar_select %p79, %s78, 0
    %p81 = scmp.lt.s32.totalorder %s80, 0
    %s82 = scalar_select %p81, %s80, 0
    %s83 = smul.addr %s82, 8
    %s84 = scalar_lea.vmem %s3, %s83
    %s85 = sadd.s32 0, 0
    %p86 = scmp.lt.s32.totalorder %s85, 0
    %s87 = scalar_select %p86, %s85, 0
    %s88 = sadd.s32 0, 0
    %p89 = scmp.lt.s32.totalorder %s88, 0
    %s90 = scalar_select %p89, %s88, 0
    %s91 = sadd.s32 0, 0
    %p92 = scmp.lt.s32.totalorder %s91, 0
    %s93 = scalar_select %p92, %s91, 0
    %s94 = sadd.s32 0, 0
    %p95 = scmp.lt.s32.totalorder %s94, 0
    %s96 = scalar_select %p95, %s94, 0
    %p97 = scmp.lt.s32.totalorder %s96, 0
    %s98 = scalar_select %p97, %s96, 0
    %s99 = smul.addr %s98, 8
    %s100 = scalar_lea.vmem %s3, %s99
    %s101 = sadd.s32 0, 0
    %p102 = scmp.lt.s32.totalorder %s101, 0
    %s103 = scalar_select %p102, %s101, 0
    %p104 = scmp.eq.s32.totalorder 0, 0
    // Predicated region
    $region30: #{tpu_custom_call.1} parent=1 // pred_check
      %p105 = pneg %p104
    $region31: #{tpu_custom_call.1} parent=1 // pred_check_branch
      %107 = sbr.rel (%p105) target = $region33
    $region32: #{tpu_custom_call.1} parent=1 // pred_region
      %vm108 = vcmask 0
      %109 = vst.msk [vmem:[#allocation2] sm:$0x1] %vm108, 0.0
    $region33: #{tpu_custom_call.1} parent=1 // pred_fallthru
      _
    %v110 = vld [vmem:[#allocation3] sm:$0xff]
    %v111 = vld [vmem:[#allocation6] sm:$0xff]
    %v112 = vadd.f32 %v110, %v111
    %v113 = vld [vmem:[#allocation8] sm:$0xff]
    %v114 = vadd.f32 %v112, %v113
    %v115 = vld [vmem:[%s100] sm:$0xff]
    %v116 = vadd.f32 %v114, %v115
    %v117 = vmul.f32 %v116, 0.25
    %v118 = vmul.f32 %v117, %v117
    %vm119 = vcmask 261120
    %v120 = vsel %vm119, %v118, 0.0
    %121 = vadd.xlane.f32.xlu0 %v120
    %v122 = vpop.xlane.xlu0 %121
    %v123 = vmul.f32 %v110, %v117
    %v124 = vsel %vm119, %v123, 0.0
    %125 = vadd.xlane.f32.xlu0 %v124
    %v126 = vpop.xlane.xlu0 %125
    %v127 = vmul.f32 %v110, %v110
    %v128 = vsel %vm119, %v127, 0.0
    %129 = vadd.xlane.f32.xlu0 %v128
    %v130 = vpop.xlane.xlu0 %129
    %v131 = vmul.f32 %v130, %v122
    %v132 = vmax.f32 %v131, 1e-16
    %v133 = vrsqrt.pop %v132
    %v134 = vmul.f32 %v126, %v133
    %v135 = vadd.f32 %v134, 0.0
    %v136 = vmul.f32 %v111, %v117
    %v137 = vsel %vm119, %v136, 0.0
    %138 = vadd.xlane.f32.xlu0 %v137
    %v139 = vpop.xlane.xlu0 %138
    %v140 = vmul.f32 %v111, %v111
    %v141 = vsel %vm119, %v140, 0.0
    %142 = vadd.xlane.f32.xlu0 %v141
    %v143 = vpop.xlane.xlu0 %142
    %v144 = vmul.f32 %v143, %v122
    %v145 = vmax.f32 %v144, 1e-16
    %v146 = vrsqrt.pop %v145
    %v147 = vmul.f32 %v139, %v146
    %v148 = vadd.f32 %v135, %v147
    %v149 = vmul.f32 %v113, %v117
    %v150 = vsel %vm119, %v149, 0.0
    %151 = vadd.xlane.f32.xlu0 %v150
    %v152 = vpop.xlane.xlu0 %151
    %v153 = vmul.f32 %v113, %v113
    %v154 = vsel %vm119, %v153, 0.0
    %155 = vadd.xlane.f32.xlu0 %v154
    %v156 = vpop.xlane.xlu0 %155
    %v157 = vmul.f32 %v156, %v122
    %v158 = vmax.f32 %v157, 1e-16
    %v159 = vrsqrt.pop %v158
    %v160 = vmul.f32 %v152, %v159
    %v161 = vadd.f32 %v148, %v160
    %v162 = vmul.f32 %v115, %v117
    %v163 = vsel %vm119, %v162, 0.0
    %164 = vadd.xlane.f32.xlu0 %v163
    %v165 = vpop.xlane.xlu0 %164
    %v166 = vmul.f32 %v115, %v115
    %v167 = vsel %vm119, %v166, 0.0
    %168 = vadd.xlane.f32.xlu0 %v167
    %v169 = vpop.xlane.xlu0 %168
    %v170 = vmul.f32 %v169, %v122
    %v171 = vmax.f32 %v170, 1e-16
    %v172 = vrsqrt.pop %v171
    %v173 = vmul.f32 %v165, %v172
    %v174 = vadd.f32 %v161, %v173
    %v175 = vld [vmem:[#allocation2] sm:$0x1]
    %v176 = vrot.slane %v174, 4
    %v177 = vadd.f32 %v174, %v176
    %v178 = vrot.slane %v177, 2
    %v179 = vadd.f32 %v177, %v178
    %v180 = vrot.slane %v179, 1
    %v181 = vadd.f32 %v179, %v180
    %v182 = vadd.f32 %v175, %v181
    %vm183 = vcmask 0
    %184 = vst.msk [vmem:[#allocation2] sm:$0x1] %vm183, %v182
    // Predicated region
    $region34: #{tpu_custom_call.1} parent=1 // pred_check
      %p185 = pneg %p104
    $region35: #{tpu_custom_call.1} parent=1 // pred_check_branch
      %187 = sbr.rel (%p185) target = $region37
    $region36: #{tpu_custom_call.1} parent=1 // pred_region
      %v188 = vld [vmem:[#allocation2] sm:$0x1]
      %v189 = vmul.f32 %v188, 0.03125
      %v191 = vlaneseq
      %v192 = vshrl.u32 %v191, 7
      %v193 = vsub.s32 0, %v192
      %v194 = vrot.slane %v189, %v193
      %195 = vset.pattern.permute.xlu0 0
      %196 = vperm.xlu0 %195, %v194
      %v197 = vpop.permute.xlu0 %196
      %199 = vst [vmem:[#allocation9] sm:$0xff] %v197
    $region37: #{tpu_custom_call.1} parent=1 // pred_fallthru
      _
    // Predicated region
    $region38: #{tpu_custom_call.1} parent=1 // pred_check
      _
    $region39: #{tpu_custom_call.1} parent=1 // pred_check_branch
      %201 = sbr.rel (0) target = $region41
    $region40: #{tpu_custom_call.1} parent=1 // pred_region
      %s203 = ssub.s32 128, 128
      %204 = vsyncadd [#allocation5], %s203
      %s206 = sshll.u32 [#allocation9], 4
      %s207 = int_to_ptr.vmem [resolvable:$true] %s206
      %209 = dma.vmem_to_hbm [thread:$0]  %s207, 128, %s4, [#allocation5]
    $region41: #{tpu_custom_call.1} parent=1 // pred_fallthru
      _
    // Predicated region
    $region42: #{tpu_custom_call.1} parent=1 // pred_check
      _
    $region43: #{tpu_custom_call.1} parent=1 // pred_check_branch
      %211 = sbr.rel (0) target = $region45
    $region44: #{tpu_custom_call.1} parent=1 // pred_region
      %212 = dma.done [#allocation5], 128
    $region45: #{tpu_custom_call.1} parent=1 // pred_fallthru
      _
    %213 = vsyncpa [#allocation4], 1
    %214 = vsyncpa [#allocation7], 1
    %215 = vsyncpa [#allocation5], 1

</llo_original>
